<compile_context>
chip_gen: v7x
topology: tpu7x:2x2x1
jax: 0.10.0
libtpu: 0.0.40
codegen_flags: <defaults>
</compile_context>

<pallas_src>
import jax
import jax.numpy as jnp
from jax.experimental import pallas as pl
from jax.experimental.pallas import tpu as pltpu

_TARGET_BLOCK_BYTES = 2 * 1024 * 1024          # ~2 MiB per block
_WIDTH_CANDIDATES = (4096, 2048, 1024, 512, 256, 128)
_PAD_WIDTH = 512                                # fallback slab width if padding needed


def _clamped_relu_kernel(amax_ref, x_ref, o_ref):
    # Elementwise clamp to [0, activation_max] on the VPU, in the input dtype.
    x = x_ref[...]
    amax = amax_ref[0].astype(x.dtype)
    zero = jnp.zeros((), dtype=x.dtype)
    o_ref[...] = jnp.minimum(jnp.maximum(x, zero), amax)


def clamped_relu(x, activation_max):
    """Pallas TPU implementation of torch.clamp(x, 0, activation_max)."""
    orig_shape = x.shape
    dtype = x.dtype
    n = int(x.size)

    # --- choose a lane-dense slab layout [rows, width] ----------------------
    width = None
    for w in _WIDTH_CANDIDATES:
        if n % w == 0 and n >= w:
            width = w
            break

    flat = x.reshape(-1)
    if width is None:
        # Awkward size: minimal pad up to a multiple of _PAD_WIDTH.
        width = _PAD_WIDTH
        n_pad = pl.cdiv(n, width) * width
        flat = jnp.pad(flat, (0, n_pad - n))
        padded = True
    else:
        n_pad = n
        padded = False

    rows = n_pad // width
    slab = flat.reshape(rows, width)

    # --- choose row tile: ~2 MiB block, multiple of the dtype sublane pack --
    dtype_bytes = jnp.dtype(dtype).itemsize
    pack = max(1, 4 // max(1, dtype_bytes)) * 8      # 8 f32, 16 bf16, 32 int8
    target_rows = max(pack, _TARGET_BLOCK_BYTES // (width * dtype_bytes))
    target_rows = max(pack, (target_rows // pack) * pack)

    if rows <= target_rows:
        row_tile = rows                               # single block (full dim)
    else:
        row_tile = target_rows
    grid = (pl.cdiv(rows, row_tile),)

    # activation_max as a runtime scalar operand (SMEM) -> no recompile per value.
    amax_arr = jnp.asarray([activation_max], dtype=jnp.float32)

    out = pl.pallas_call(
        _clamped_relu_kernel,
        out_shape=jax.ShapeDtypeStruct((rows, width), dtype),
        grid=grid,
        in_specs=[
            pl.BlockSpec(memory_space=pltpu.MemorySpace.SMEM),        # amax (1,)
            pl.BlockSpec((row_tile, width), lambda i: (i, 0)),        # x slab
        ],
        out_specs=pl.BlockSpec((row_tile, width), lambda i: (i, 0)),
        compiler_params=pltpu.CompilerParams(
            dimension_semantics=("parallel",),        # shard blocks across TCs
            vmem_limit_bytes=32 * 1024 * 1024,        # safe on v5e/v6e/v7x
        ),
    )(amax_arr, slab)

    if padded:
        return out.reshape(-1)[:n].reshape(orig_shape)
    return out.reshape(orig_shape)


if __name__ == "__main__":
    key = jax.random.PRNGKey(0)
    # Small NCHW input consistent with a conv-style activation tensor.
    x = jax.random.normal(key, (2, 4, 16, 16), dtype=jnp.float32) * 3.0

    activation_max = 1.5  # the module's __init__ argument
    y = clamped_relu(x, activation_max)
    y = jax.block_until_ready(y)

    # Reference check (same semantics as torch.clamp(x, 0, activation_max)).
    y_ref = jnp.clip(x, 0.0, activation_max)
    assert y.shape == x.shape and y.dtype == x.dtype
    assert jnp.allclose(y, y_ref), "mismatch vs reference clamp"

    print("KERNEL_OK")
</pallas_src>

<mosaic_0001>
module attributes {stable_mosaic.version = 11 : i64} {
  func.func @_clamped_relu_kernel(%arg0: i32, %arg1: memref<1xf32, #tpu.memory_space<smem>>, %arg2: memref<1x2048xf32, #tpu.memory_space<vmem>>, %arg3: memref<1x2048xf32, #tpu.memory_space<vmem>>) attributes {dimension_semantics = [#tpu.dimension_semantics<parallel>], iteration_bounds = array<i64: 1>, scalar_prefetch = 0 : i64, scratch_operands = 0 : i64, tpu.core_type = #tpu.core_type<tc>, window_params = [{transform_indices = @transform_0, window_bounds = array<i64: 1>}, {transform_indices = @transform_1, window_bounds = array<i64: 1, 2048>}, {transform_indices = @transform_2, window_bounds = array<i64: 1, 2048>}]} {
    %c0 = arith.constant 0 : index
    %c0_0 = arith.constant 0 : index
    %0 = vector.load %arg2[%c0, %c0_0] : memref<1x2048xf32, #tpu.memory_space<vmem>>, vector<1x2048xf32>
    %c0_1 = arith.constant 0 : index
    %1 = memref.load %arg1[%c0_1] : memref<1xf32, #tpu.memory_space<smem>>
    %cst = arith.constant 0.000000e+00 : f32
    %2 = vector.broadcast %cst : f32 to vector<1x2048xf32>
    %3 = arith.maximumf %0, %2 : vector<1x2048xf32>
    %4 = vector.broadcast %1 : f32 to vector<1x2048xf32>
    %5 = arith.minimumf %3, %4 : vector<1x2048xf32>
    %c0_2 = arith.constant 0 : index
    %c0_3 = arith.constant 0 : index
    %6 = vector.load %arg3[%c0_2, %c0_3] : memref<1x2048xf32, #tpu.memory_space<vmem>>, vector<1x2048xf32>
    tpu.vector_store %arg3[%c0_2, %c0_3], %5 {strides = array<i32>} : memref<1x2048xf32, #tpu.memory_space<vmem>>, vector<1x2048xf32>,
    return
  }
  func.func @transform_0(%arg0: i32) -> i32 {
    %c0_i32 = arith.constant 0 : i32
    %c0_i32_0 = arith.constant 0 : i32
    return %c0_i32 : i32
  }
  func.func @transform_1(%arg0: i32) -> (i32, i32) {
    %c0_i32 = arith.constant 0 : i32
    %c0_i32_0 = arith.constant 0 : i32
    return %arg0, %c0_i32 : i32, i32
  }
  func.func @transform_2(%arg0: i32) -> (i32, i32) {
    %c0_i32 = arith.constant 0 : i32
    %c0_i32_0 = arith.constant 0 : i32
    return %arg0, %c0_i32 : i32, i32
  }
}

</mosaic_0001>

<llo_original>
// kernel: tpu_custom_call.1
$region0: #{tpu_custom_call.1}
  #allocation0 [shape = 'u32[]', space=smem, size = 0x4, offset = 0x4, fixed_abs, tag = 'smem constant byte address 0x4 - core index']
  #allocation1 [shape = 'u32[144,128]{1,0:T(1,128)}', space=vmem, size = 0x12000, scoped, tag = 'internal scratch']
  #allocation2 [shape = 'f32[1]{0:T(128)S(6)}', space=smem, size = 0x200, scoped, tag = 'scoped memory for tpu_custom_call.1']
  %s0 = inlined_call_operand.<no memory space> [shape: f32[1], index: 0, kind: input, shape index: {}]
  %s1 = inlined_call_operand.hbm [shape: f32[1,2048], index: 1, kind: input, shape index: {}]
  %s2 = inlined_call_operand.hbm [shape: f32[1,2048], index: 2, kind: output, shape index: {}]
  %s3 = sld [smem:[#allocation0]]
  $region22: #{tpu_custom_call.1} parent=0
    _
  %s5 = ssub.s32 1, %s3
  %s6 = scalar_select 0, %s5, %s3
  %7 = sst [smem:[#allocation2]] %s0
  $region1: #{tpu_custom_call.1} parent=0
    #allocation3 [shape = 'u8[8192]{0}', space=vmem, size = 0x2000, scoped, tag = 'input window, operand 1, single buffered']
    #allocation4 [shape = 's32[1]{0}', space=sflag, size = 0x4, scoped, tag = 'scoped memory for tpu_custom_call.1']
    #allocation5 [shape = 's32[1]{0}', space=sflag, size = 0x4, scoped, tag = 'scoped memory for tpu_custom_call.1']
    #allocation6 [shape = 'u8[8192]{0}', space=vmem, size = 0x2000, scoped, tag = 'output window, operand 0, single buffered']
    %8 = vsyncpa [#allocation4], 0
    %9 = vsyncpa [#allocation5], 0
    // Predicated region
    $region2: #{tpu_custom_call.1} parent=1 // pred_check
      _
    $region3: #{tpu_custom_call.1} parent=1 // pred_check_branch
      %11 = sbr.rel (0) target = $region5
    $region4: #{tpu_custom_call.1} parent=1 // pred_region
      _
    $region5: #{tpu_custom_call.1} parent=1 // pred_fallthru
      _
    // Predicated region
    $region6: #{tpu_custom_call.1} parent=1 // pred_check
      _
    $region7: #{tpu_custom_call.1} parent=1 // pred_check_branch
      %13 = sbr.rel (0) target = $region9
    $region8: #{tpu_custom_call.1} parent=1 // pred_region
      %s15 = ssub.s32 256, 256
      %16 = vsyncadd [#allocation4], %s15
      %s18 = sshll.u32 [#allocation3], 4
      %s19 = int_to_ptr.vmem [resolvable:$true] %s18
      %21 = dma.hbm_to_vmem [thread:$0]  %s1, 256, %s19, [#allocation4]
    $region9: #{tpu_custom_call.1} parent=1 // pred_fallthru
      _
    // Predicated region
    $region10: #{tpu_custom_call.1} parent=1 // pred_check
      _
    $region11: #{tpu_custom_call.1} parent=1 // pred_check_branch
      %23 = sbr.rel (0) target = $region13
    $region12: #{tpu_custom_call.1} parent=1 // pred_region
      %24 = dma.done [#allocation4], 256
    $region13: #{tpu_custom_call.1} parent=1 // pred_fallthru
      _
    %v25 = vld [vmem:[#allocation3] sm:$0xff]
    %v26 = vld [vmem:[#allocation3 + $0x8] sm:$0xff]
    %s27 = sld [smem:[#allocation2]]
    %v28 = vmax.f32 %v25, 0.0
    %v29 = vmax.f32 %v26, 0.0
    %v30 = vstv %s27
    %v31 = vmin.f32 %v28, %v30
    %v32 = vmin.f32 %v29, %v30
    %33 = vst [vmem:[#allocation6] sm:$0xff] %v31
    %34 = vst [vmem:[#allocation6 + $0x8] sm:$0xff] %v32
    // Predicated region
    $region14: #{tpu_custom_call.1} parent=1 // pred_check
      _
    $region15: #{tpu_custom_call.1} parent=1 // pred_check_branch
      %36 = sbr.rel (0) target = $region17
    $region16: #{tpu_custom_call.1} parent=1 // pred_region
      %s38 = ssub.s32 256, 256
      %39 = vsyncadd [#allocation5], %s38
      %s41 = sshll.u32 [#allocation6], 4
      %s42 = int_to_ptr.vmem [resolvable:$true] %s41
      %44 = dma.vmem_to_hbm [thread:$0]  %s42, 256, %s2, [#allocation5]
    $region17: #{tpu_custom_call.1} parent=1 // pred_fallthru
      _
    // Predicated region
    $region18: #{tpu_custom_call.1} parent=1 // pred_check
      _
    $region19: #{tpu_custom_call.1} parent=1 // pred_check_branch
      %46 = sbr.rel (0) target = $region21
    $region20: #{tpu_custom_call.1} parent=1 // pred_region
      %47 = dma.done [#allocation5], 256
    $region21: #{tpu_custom_call.1} parent=1 // pred_fallthru
      _
    %48 = vsyncpa [#allocation4], 1
    %49 = vsyncpa [#allocation5], 1

</llo_original>
